<compile_context>
chip_gen: v7x
topology: tpu7x:2x2x1
jax: 0.10.0
libtpu: 0.0.40
codegen_flags: <defaults>
</compile_context>

<pallas_src>
import functools
import math

import jax
import jax.numpy as jnp
from jax.experimental import pallas as pl
from jax.experimental.pallas import tpu as pltpu


# ----------------------------------------------------------------------------------
# 1) TransformerDecoder1.get_reference_points as a Pallas kernel
# ----------------------------------------------------------------------------------
def _ref_points_kernel(vr_ref, refc_ref, out_ref):
    # vr_ref  : [1, 2L, 1]  f32   per-batch valid ratios, broadcast over lanes
    # refc_ref: [2L, HWp]   f32   (x, y, x, y, ...) reference grid rows (constant)
    # out_ref : [1, 2L, HWp] f32
    out_ref[0] = refc_ref[...] * vr_ref[0]


def get_reference_points(valid_ratios, *, H, W):
    """valid_ratios: [B, L, 2] f32 -> reference_points: [B, H*W, L, 2] f32."""
    B, L, two = valid_ratios.shape
    assert two == 2
    HW = H * W
    HWp = ((HW + 127) // 128) * 128          # lane-dense padding

    # Host-built reference grid (matches torch.linspace(0.5, H-0.5, H)/H etc).
    y = (jnp.arange(H, dtype=jnp.float32) + 0.5) / H
    x = (jnp.arange(W, dtype=jnp.float32) + 0.5) / W
    ref_y = jnp.broadcast_to(y[:, None], (H, W)).reshape(HW)
    ref_x = jnp.broadcast_to(x[None, :], (H, W)).reshape(HW)
    ref_x = jnp.pad(ref_x, (0, HWp - HW))
    ref_y = jnp.pad(ref_y, (0, HWp - HW))
    refc = jnp.tile(jnp.stack([ref_x, ref_y], axis=0), (L, 1))     # [2L, HWp]

    vr_prep = valid_ratios.astype(jnp.float32).reshape(B, 2 * L, 1)

    out_flat = pl.pallas_call(
        _ref_points_kernel,
        out_shape=jax.ShapeDtypeStruct((B, 2 * L, HWp), jnp.float32),
        grid_spec=pltpu.PrefetchScalarGridSpec(
            num_scalar_prefetch=0,
            grid=(B,),
            in_specs=[
                pl.BlockSpec((1, 2 * L, 1), lambda b: (b, 0, 0)),
                pl.BlockSpec((2 * L, HWp), lambda b: (0, 0)),   # constant, VMEM-resident
            ],
            out_specs=pl.BlockSpec((1, 2 * L, HWp), lambda b: (b, 0, 0)),
        ),
        compiler_params=pltpu.CompilerParams(dimension_semantics=("parallel",)),
    )(vr_prep, refc)

    # Lane-dense kernel output -> PyTorch layout [B, HW, L, 2] (wrapper-side plumbing).
    out = out_flat[:, :, :HW].reshape(B, L, 2, HW)
    return jnp.transpose(out, (0, 3, 1, 2))


def transformer_decoder1_forward(tgt, memory, reference_points, memory_spatial_shapes,
                                 layer_apply_fns, memory_mask=None, query_pos_embed=None,
                                 return_intermediate=False):
    """Structural forward of TransformerDecoder1.

    TODO(synk): decoder_layer is an opaque module in the spec (class not provided);
    callers must supply per-layer apply functions (e.g. Pallas attention/MLP kernels).
    """
    output = tgt
    intermediate = []
    for layer in layer_apply_fns:
        output = layer(output, reference_points, memory, memory_spatial_shapes,
                       memory_mask, query_pos_embed)
        if return_intermediate:
            intermediate.append(output)
    if return_intermediate:
        return jnp.stack(intermediate)
    return output


# ----------------------------------------------------------------------------------
# 2) Sine PositionEmbedding forward (reviewed kernel, perf feedback applied)
# ----------------------------------------------------------------------------------
def _pos_embed_sine_kernel(mask_ref, scomb_ref, out_ref, *,
                           offset, eps, scale, num_pos_feats, temperature, hw):
    # mask_ref : [Bblk, HWp]     bf16  (batched, flattened spatial, lane-dense)
    # scomb_ref: [HWp, 4*HWp]    bf16  (cumsum_y | cumsum_x | denom_y | denom_x)
    # out_ref  : [Bblk, 2C, HWp] f32
    C = num_pos_feats
    m = mask_ref[...]                                  # bf16, fed straight to the MXU

    # One batched MXU matmul (M=Bblk) produces cumsum over H, cumsum over W and both
    # normalization denominators (last-row / last-col totals replicated per position).
    r = jnp.dot(m, scomb_ref[...], preferred_element_type=jnp.float32)   # [Bblk, 4*HWp]
    y_emb = r[:, 0 * hw:1 * hw]
    x_emb = r[:, 1 * hw:2 * hw]
    y_den = r[:, 2 * hw:3 * hw]
    x_den = r[:, 3 * hw:4 * hw]

    # normalize=True branch; scaling done on the [Bblk, HWp] rows only.
    y_n = (y_emb + offset) * (scale / (y_den + eps))   # [Bblk, HWp]
    x_n = (x_emb + offset) * (scale / (x_den + eps))

    # Per-channel 1/dim_t and sin/cos phase (tiny [C,1]); with the batched grid this
    # runs once (or twice) per call rather than once per sample.
    cidx = jax.lax.broadcasted_iota(jnp.int32, (C, 1), 0)
    odd = jnp.bitwise_and(cidx, 1)                     # 1 for odd channels (-> cos)
    freq_exp = (cidx - odd).astype(jnp.float32) * (1.0 / C)          # 2*(c//2)/C
    inv_dim_t = jnp.exp(freq_exp * (-math.log(temperature)))         # [C,1] == 1/dim_t
    phase = odd.astype(jnp.float32) * (0.5 * math.pi)                # cos(a)=sin(a+pi/2)

    arg_y = y_n[:, None, :] * inv_dim_t[None, :, :] + phase[None, :, :]   # [Bblk,C,HWp]
    arg_x = x_n[:, None, :] * inv_dim_t[None, :, :] + phase[None, :, :]

    # No concatenate: write each half directly (C is sublane-aligned, HWp lane-aligned).
    out_ref[:, :C, :] = jnp.sin(arg_y)
    out_ref[:, C:, :] = jnp.sin(arg_x)


def position_embedding_sine(mask, *, num_pos_feats=32, temperature=10000.0,
                            scale=2.0 * math.pi, offset=0.0, eps=1e-6,
                            batch_block=None):
    """mask: [B, H, W] bool -> pos: [B, 2*num_pos_feats, H, W] f32 (NCHW)."""
    B, H, W = mask.shape
    C = num_pos_feats
    assert C % 2 == 0
    HW = H * W
    HWp = ((HW + 127) // 128) * 128          # lane-dense padding (review item)

    if batch_block is None:
        # One step with M=B for small batches (real MXU rows, amortized ~0.35us/step
        # overhead); split into >=2 "parallel" steps once the batch is large enough so
        # both v7x TensorCores get work; cap the block so VMEM stays modest.
        batch_block = B if B <= 8 else -(-B // 2)
        batch_block = min(batch_block, 32)
    n_steps = pl.cdiv(B, batch_block)
    Bpad = n_steps * batch_block

    # Streamed input in bf16 (halves HBM->VMEM traffic; 0/1 values are exact).
    mask_flat = jnp.asarray(mask).astype(jnp.bfloat16).reshape(B, HW)
    mask_flat = jnp.pad(mask_flat, ((0, Bpad - B), (0, HWp - HW)))

    # Combined constant matrix [HWp, 4*HWp] in bf16 (0/1 entries are exact; the MXU
    # accumulates in f32 so integer cumsums <= max(H,W) stay exact):
    #   cols 0..HWp-1     : cumsum over H  (S_y)
    #   cols HWp..2HWp-1  : cumsum over W  (S_x)
    #   cols 2HWp..3HWp-1 : column totals  (y normalization denominator)
    #   cols 3HWp..4HWp-1 : row totals     (x normalization denominator)
    # Padded flat indices get hi >= H; their mask entries are 0 so they never contribute.
    idx = jnp.arange(HWp, dtype=jnp.int32)
    hi, wi = idx // W, idx % W
    rh, rw = hi[:, None], wi[:, None]     # source (row) flat index
    ch, cw = hi[None, :], wi[None, :]     # destination (col) flat index
    same_col = rw == cw
    same_row = rh == ch
    s_y = (same_col & (rh <= ch)).astype(jnp.bfloat16)
    s_x = (same_row & (rw <= cw)).astype(jnp.bfloat16)
    d_y = same_col.astype(jnp.bfloat16)
    d_x = same_row.astype(jnp.bfloat16)
    scomb = jnp.concatenate([s_y, s_x, d_y, d_x], axis=1)          # [HWp, 4*HWp] bf16

    kernel = functools.partial(_pos_embed_sine_kernel, offset=float(offset),
                               eps=float(eps), scale=float(scale), num_pos_feats=C,
                               temperature=float(temperature), hw=HWp)

    out_flat = pl.pallas_call(
        kernel,
        out_shape=jax.ShapeDtypeStruct((Bpad, 2 * C, HWp), jnp.float32),
        grid_spec=pltpu.PrefetchScalarGridSpec(
            num_scalar_prefetch=0,
            grid=(n_steps,),
            in_specs=[
                pl.BlockSpec((batch_block, HWp), lambda b: (b, 0)),
                # Constant index_map: DMA'd once, stays VMEM-resident across the grid.
                # TODO(synk): at production HW sizes, single-buffer this constant
                # (pipeline_mode=pl.Buffered(1)) or use the separable H/W cumsum form.
                pl.BlockSpec((HWp, 4 * HWp), lambda b: (0, 0)),
            ],
            out_specs=pl.BlockSpec((batch_block, 2 * C, HWp), lambda b: (b, 0, 0)),
        ),
        compiler_params=pltpu.CompilerParams(dimension_semantics=("parallel",)),
    )(mask_flat, scomb)

    return out_flat[:B, :, :HW].reshape(B, 2 * C, H, W)


# ----------------------------------------------------------------------------------
# Pure-JAX references
# ----------------------------------------------------------------------------------
def _reference_points_ref(valid_ratios, H, W):
    y = (jnp.arange(H, dtype=jnp.float32) + 0.5) / H
    x = (jnp.arange(W, dtype=jnp.float32) + 0.5) / W
    ref_y = jnp.broadcast_to(y[:, None], (H, W)).reshape(-1)
    ref_x = jnp.broadcast_to(x[None, :], (H, W)).reshape(-1)
    ref = jnp.stack([ref_x, ref_y], axis=-1)                       # [HW, 2]
    return ref[None, :, None, :] * valid_ratios[:, None, :, :]     # [B, HW, L, 2]


def _reference_sine(mask, num_pos_feats, temperature, scale, offset, eps):
    m = mask.astype(jnp.float32)
    y_embed = jnp.cumsum(m, axis=1)
    x_embed = jnp.cumsum(m, axis=2)
    y_embed = (y_embed + offset) / (y_embed[:, -1:, :] + eps) * scale
    x_embed = (x_embed + offset) / (x_embed[:, :, -1:] + eps) * scale
    dim_t = 2 * (jnp.arange(num_pos_feats) // 2)
    dim_t = temperature ** (dim_t.astype(jnp.float32) / num_pos_feats)
    pos_x = x_embed[..., None] / dim_t
    pos_y = y_embed[..., None] / dim_t
    B, H, W = m.shape
    pos_x = jnp.stack((jnp.sin(pos_x[..., 0::2]), jnp.cos(pos_x[..., 1::2])),
                      axis=4).reshape(B, H, W, num_pos_feats)
    pos_y = jnp.stack((jnp.sin(pos_y[..., 0::2]), jnp.cos(pos_y[..., 1::2])),
                      axis=4).reshape(B, H, W, num_pos_feats)
    pos = jnp.concatenate((pos_y, pos_x), axis=3).transpose(0, 3, 1, 2)
    return pos


if __name__ == "__main__":
    key = jax.random.PRNGKey(0)
    B, H, W, L, C = 2, 16, 16, 4, 32
    k1, k2 = jax.random.split(key)

    # --- get_reference_points kernel ---
    valid_ratios = jax.random.uniform(k1, (B, L, 2), minval=0.5, maxval=1.0,
                                      dtype=jnp.float32)
    refpts = jax.block_until_ready(get_reference_points(valid_ratios, H=H, W=W))
    refpts_ref = _reference_points_ref(valid_ratios, H, W)
    err_ref = float(jnp.max(jnp.abs(refpts - refpts_ref)))

    # --- sine position-embedding kernel ---
    mask = jax.random.bernoulli(k2, 0.7, (B, H, W))       # bool [B, H, W]
    pos = jax.block_until_ready(position_embedding_sine(mask, num_pos_feats=C))
    pos_ref = _reference_sine(mask, C, 10000.0, 2.0 * math.pi, 0.0, 1e-6)
    err_pos = float(jnp.max(jnp.abs(pos - pos_ref)))

    ok = (refpts.shape == (B, H * W, L, 2) and pos.shape == (B, 2 * C, H, W)
          and err_ref < 1e-5 and err_pos < 1e-3)
    if ok:
        print("KERNEL_OK")
    else:
        print(f"mismatch: reference_points err={err_ref}, sine err={err_pos}")
</pallas_src>

<mosaic_0001>
module attributes {stable_mosaic.version = 11 : i64} {
  func.func @_ref_points_kernel(%arg0: i32, %arg1: memref<1x8x1xf32, #tpu.memory_space<vmem>>, %arg2: memref<8x256xf32, #tpu.memory_space<vmem>>, %arg3: memref<1x8x256xf32, #tpu.memory_space<vmem>>) attributes {dimension_semantics = [#tpu.dimension_semantics<parallel>], iteration_bounds = array<i64: 2>, scalar_prefetch = 0 : i64, scratch_operands = 0 : i64, tpu.core_type = #tpu.core_type<tc>, window_params = [{transform_indices = @transform_0, window_bounds = array<i64: 1, 8, 1>}, {pipeline_mode = #tpu.pipeline_mode<synchronous>, transform_indices = @transform_1, window_bounds = array<i64: 8, 256>}, {transform_indices = @transform_2, window_bounds = array<i64: 1, 8, 256>}]} {
    %c0 = arith.constant 0 : index
    %c0_0 = arith.constant 0 : index
    %0 = vector.load %arg2[%c0, %c0_0] : memref<8x256xf32, #tpu.memory_space<vmem>>, vector<8x256xf32>
    %c0_1 = arith.constant 0 : index
    %c0_2 = arith.constant 0 : index
    %c0_3 = arith.constant 0 : index
    %1 = vector.load %arg1[%c0_1, %c0_2, %c0_3] : memref<1x8x1xf32, #tpu.memory_space<vmem>>, vector<1x8x1xf32>
    %2 = vector.shape_cast %1 : vector<1x8x1xf32> to vector<8x1xf32>
    %3 = vector.broadcast %2 : vector<8x1xf32> to vector<8x256xf32>
    %4 = arith.mulf %0, %3 : vector<8x256xf32>
    %c0_4 = arith.constant 0 : index
    %c0_5 = arith.constant 0 : index
    %c0_6 = arith.constant 0 : index
    %5 = vector.load %arg3[%c0_4, %c0_5, %c0_6] : memref<1x8x256xf32, #tpu.memory_space<vmem>>, vector<1x8x256xf32>
    %6 = vector.shape_cast %5 : vector<1x8x256xf32> to vector<8x256xf32>
    %7 = vector.shape_cast %4 : vector<8x256xf32> to vector<1x8x256xf32>
    tpu.vector_store %arg3[%c0_4, %c0_5, %c0_6], %7 {strides = array<i32>} : memref<1x8x256xf32, #tpu.memory_space<vmem>>, vector<1x8x256xf32>,
    return
  }
  func.func @transform_0(%arg0: i32) -> (i32, i32, i32) {
    %c0_i32 = arith.constant 0 : i32
    %c0_i32_0 = arith.constant 0 : i32
    %c0_i32_1 = arith.constant 0 : i32
    return %arg0, %c0_i32, %c0_i32_0 : i32, i32, i32
  }
  func.func @transform_1(%arg0: i32) -> (i32, i32) {
    %c0_i32 = arith.constant 0 : i32
    %c0_i32_0 = arith.constant 0 : i32
    %c0_i32_1 = arith.constant 0 : i32
    return %c0_i32, %c0_i32_0 : i32, i32
  }
  func.func @transform_2(%arg0: i32) -> (i32, i32, i32) {
    %c0_i32 = arith.constant 0 : i32
    %c0_i32_0 = arith.constant 0 : i32
    %c0_i32_1 = arith.constant 0 : i32
    return %arg0, %c0_i32, %c0_i32_0 : i32, i32, i32
  }
}

</mosaic_0001>

<llo_original>
// kernel: tpu_custom_call.1
$region0: #{tpu_custom_call.1}
  #allocation0 [shape = 'u32[]', space=smem, size = 0x4, offset = 0x4, fixed_abs, tag = 'smem constant byte address 0x4 - core index']
  #allocation1 [shape = 'u32[144,128]{1,0:T(1,128)}', space=vmem, size = 0x12000, scoped, tag = 'internal scratch']
  %s0 = inlined_call_operand.vmem [shape: f32[2,8,1], index: 0, kind: input, shape index: {}]
  %s1 = inlined_call_operand.vmem [shape: f32[8,256], index: 1, kind: input, shape index: {}]
  %s2 = inlined_call_operand.hbm [shape: f32[2,8,256], index: 2, kind: output, shape index: {}]
  %s3 = sld [smem:[#allocation0]]
  $region41: #{tpu_custom_call.1} parent=0
    _
  %s5 = ssub.s32 1, %s3
  %s6 = scalar_select 0, %s5, %s3
  $region1: #{tpu_custom_call.1} parent=0
    #allocation2 [shape = 'u8[16384]{0}', space=vmem, size = 0x4000, scoped, tag = 'output window, operand 0']
    #allocation3 [shape = 's32[2]{0}', space=sflag, size = 0x8, scoped, tag = 'scoped memory for tpu_custom_call.1']
    %7 = vsyncpa [#allocation3], 0
    %s8 = scalar_lea.sflag [#allocation3], 1
    %9 = vsyncpa %s8, 0
    loop: start=0, step=1, limit=4
    $region2: #{tpu_custom_call.1} parent=1 // loop_pre_header
      _
    $region3: #{tpu_custom_call.1} parent=1 // loop_header
      %s11 = sphi 0, %s15
      %p12 = scmp.ge.s32.totalorder %s11, 4
      %s21 = sphi 0, %s23
      %s24 = sphi 0, %s21
      %s25 = sphi 0, %s24
      %s41 = sphi 0, %s25
      %s45 = sphi 0, %s45
      %s47 = sphi 0, %s45
      %s48 = sphi 0, %s47
      %s62 = sphi 0, %s48
      %s68 = sphi 0, %s70
      %s71 = sphi 0, %s68
      %s72 = sphi 0, %s71
      %s88 = sphi 0, %s72
    $region4: #{tpu_custom_call.1} parent=1 // loop_header_branch
      %14 = sbr.rel (%p12) target = $region8
    $region5: #{tpu_custom_call.1} parent=1 // loop_body
      %s16 = ssub.s32 %s11, 1
      %s17 = ssub.s32 %s11, 2
      %s18 = sadd.s32 %s11, 1
      %s19 = ssub.s32 %s11, %s18
      %p20 = scmp.eq.s32.totalorder %s19, 0
      %s22 = sadd.s32 %s21, 1
      %s23 = scalar_select %p20, %s21, %s22
      %p26 = pneg %p20
      %p27 = scmp.eq.s32.totalorder %s11, 1
      %p28 = por %p26, %p27
      %p29 = scmp.ne.s32.totalorder %s21, %s24
      %p30 = scmp.eq.s32.totalorder %s11, 0
      %p31 = por %p29, %p30
      %p32 = scmp.ne.s32.totalorder %s21, %s24
      %p33 = scmp.eq.s32.totalorder %s16, 1
      %p34 = por %p32, %p33
      %p35 = scmp.ne.s32.totalorder %s24, %s25
      %p36 = scmp.eq.s32.totalorder %s16, 0
      %p37 = por %p35, %p36
      %p38 = scmp.ne.s32.totalorder %s24, %s25
      %p39 = scmp.eq.s32.totalorder %s17, 1
      %p40 = por %p38, %p39
      %p42 = scmp.ne.s32.totalorder %s25, %s41
      %p43 = scmp.eq.s32.totalorder %s17, 0
      %p44 = por %p42, %p43
      %s46 = sadd.s32 %s45, 1
      %p49 = scmp.eq.s32.totalorder %s11, 1
      %p50 = scmp.ne.s32.totalorder %s45, %s47
      %p51 = scmp.eq.s32.totalorder %s11, 0
      %p52 = por %p50, %p51
      %p53 = scmp.ne.s32.totalorder %s45, %s47
      %p54 = scmp.eq.s32.totalorder %s16, 1
      %p55 = por %p53, %p54
      %p56 = scmp.ne.s32.totalorder %s47, %s48
      %p57 = scmp.eq.s32.totalorder %s16, 0
      %p58 = por %p56, %p57
      %p59 = scmp.ne.s32.totalorder %s47, %s48
      %p60 = scmp.eq.s32.totalorder %s17, 1
      %p61 = por %p59, %p60
      %p63 = scmp.ne.s32.totalorder %s48, %s62
      %p64 = scmp.eq.s32.totalorder %s17, 0
      %p65 = por %p63, %p64
      %s66 = ssub.s32 %s11, %s18
      %p67 = scmp.eq.s32.totalorder %s66, 0
      %s69 = sadd.s32 %s68, 1
      %s70 = scalar_select %p67, %s68, %s69
      %p73 = pneg %p67
      %p74 = scmp.eq.s32.totalorder %s11, 1
      %p75 = por %p73, %p74
      %p76 = scmp.ne.s32.totalorder %s68, %s71
      %p77 = scmp.eq.s32.totalorder %s11, 0
      %p78 = por %p76, %p77
      %p79 = scmp.ne.s32.totalorder %s68, %s71
      %p80 = scmp.eq.s32.totalorder %s16, 1
      %p81 = por %p79, %p80
      %p82 = scmp.ne.s32.totalorder %s71, %s72
      %p83 = scmp.eq.s32.totalorder %s16, 0
      %p84 = por %p82, %p83
      %p85 = scmp.ne.s32.totalorder %s71, %s72
      %p86 = scmp.eq.s32.totalorder %s17, 1
      %p87 = por %p85, %p86
      %p89 = scmp.ne.s32.totalorder %s72, %s88
      %p90 = scmp.eq.s32.totalorder %s17, 0
      %p91 = por %p89, %p90
      %p92 = scmp.le.s32.totalorder 1, %s11
      %p93 = scmp.lt.s32.totalorder %s11, 3
      %p94 = pnand %p92, %p93
      %p95 = pneg %p94
      // Predicated region
      $region9: #{tpu_custom_call.1} parent=5 // pred_check
        _
      $region10: #{tpu_custom_call.1} parent=5 // pred_check_branch
        %97 = sbr.rel (%p94) target = $region12
      $region11: #{tpu_custom_call.1} parent=5 // pred_region
        %s98 = ssub.s32 %s11, 1
        // Predicated region
        $region13: #{tpu_custom_call.1} parent=11 // pred_check
          %p99 = pneg %p58
        $region14: #{tpu_custom_call.1} parent=11 // pred_check_branch
          %101 = sbr.rel (%p99) target = $region16
        $region15: #{tpu_custom_call.1} parent=11 // pred_region
          _
        $region16: #{tpu_custom_call.1} parent=11 // pred_fallthru
          _
      $region12: #{tpu_custom_call.1} parent=5 // pred_fallthru
        _
      %p102 = scmp.lt.s32.totalorder %s11, 2
      // Predicated region
      $region17: #{tpu_custom_call.1} parent=5 // pred_check
        %p103 = pneg %p102
      $region18: #{tpu_custom_call.1} parent=5 // pred_check_branch
        %105 = sbr.rel (%p103) target = $region20
      $region19: #{tpu_custom_call.1} parent=5 // pred_region
        // Predicated region
        $region21: #{tpu_custom_call.1} parent=19 // pred_check
          %p106 = pneg %p31
        $region22: #{tpu_custom_call.1} parent=19 // pred_check_branch
          %108 = sbr.rel (%p106) target = $region24
        $region23: #{tpu_custom_call.1} parent=19 // pred_region
          %p109 = scmp.lt.s32.totalorder %s11, 1
          %s110 = scalar_select %p109, %s11, 1
          %s111 = smul.addr %s110, 8
          %s112 = scalar_lea.vmem %s0, %s111
        $region24: #{tpu_custom_call.1} parent=19 // pred_fallthru
          _
      $region20: #{tpu_custom_call.1} parent=5 // pred_fallthru
        _
      %p113 = scmp.le.s32.totalorder 1, %s11
      %p114 = scmp.lt.s32.totalorder %s11, 3
      %p115 = pnand %p113, %p114
      %p116 = pneg %p115
      // Predicated region
      $region25: #{tpu_custom_call.1} parent=5 // pred_check
        _
      $region26: #{tpu_custom_call.1} parent=5 // pred_check_branch
        %118 = sbr.rel (%p115) target = $region28
      $region27: #{tpu_custom_call.1} parent=5 // pred_region
        %s119 = ssub.s32 %s11, 1
        %p120 = scmp.lt.s32.totalorder %s16, 1
        %s121 = scalar_select %p120, %s16, 1
        %s122 = smul.addr %s121, 8
        %s123 = scalar_lea.vmem %s0, %s122
        %p124 = pneg %p37
        %p125 = pneg %p34
        %p126 = pneg %p58
        %p127 = pneg %p55
        %p128 = pneg %p84
        %p129 = pneg %p81
        %s130 = sand.u32 %s71, 1
        %s131 = scalar_lea.sflag [#allocation3], %s130
        %s132 = sand.u32 %s71, 1
        %s133 = smul.addr %s132, 16
        %s134 = scalar_lea.vmem [#allocation2], %s133
        %p135 = scmp.lt.s32.totalorder %s16, 1
        %s136 = scalar_select %p135, %s16, 1
        %s137 = smul.addr %s136, 8
        %s138 = scalar_lea.vmem %s0, %s137
        %v139 = vld [vmem:[%s1] sm:$0xff]
        %v140 = vld [vmem:[%s1 + $0x8] sm:$0xff]
        %v141 = vld [vmem:[%s138] sm:$0xff]
        %143 = vset.pattern.permute.xlu0 0
        %144 = vperm.xlu0 %143, %v141
        %v145 = vpop.permute.xlu0 %144
        %v147 = vmul.f32 %v139, %v145
        %v148 = vmul.f32 %v140, %v145
        %149 = vst [vmem:[%s134] sm:$0xff] %v147
        %150 = vst [vmem:[%s134 + $0x8] sm:$0xff] %v148
        %s151 = sand.u32 %s71, 1
        %s152 = scalar_lea.sflag [#allocation3], %s151
        %s153 = sand.u32 %s71, 1
        %s154 = smul.addr %s153, 16
        %s155 = scalar_lea.vmem [#allocation2], %s154
        // Predicated region
        $region29: #{tpu_custom_call.1} parent=27 // pred_check
          %p156 = pneg %p81
        $region30: #{tpu_custom_call.1} parent=27 // pred_check_branch
          %158 = sbr.rel (%p156) target = $region32
        $region31: #{tpu_custom_call.1} parent=27 // pred_region
          %s160 = ssub.s32 256, 256
          %161 = vsyncadd %s152, %s160
          %s162 = smul.addr %s16, 2
          %s163 = smul.addr %s162, 128
          %s164 = scalar_lea.hbm %s2, %s163
          %s166 = sshll.u32 %s155, 4
          %s167 = int_to_ptr.vmem [resolvable:$true] %s166
          %169 = dma.vmem_to_hbm [thread:$0]  %s167, 256, %s164, %s152
        $region32: #{tpu_custom_call.1} parent=27 // pred_fallthru
          _
      $region28: #{tpu_custom_call.1} parent=5 // pred_fallthru
        _
      %p170 = scmp.le.s32.totalorder 2, %s11
      // Predicated region
      $region33: #{tpu_custom_call.1} parent=5 // pred_check
        %p171 = pneg %p170
      $region34: #{tpu_custom_call.1} parent=5 // pred_check_branch
        %173 = sbr.rel (%p171) target = $region36
      $region35: #{tpu_custom_call.1} parent=5 // pred_region
        %s174 = ssub.s32 %s11, 2
        // Predicated region
        $region37: #{tpu_custom_call.1} parent=35 // pred_check
          %p175 = pneg %p87
        $region38: #{tpu_custom_call.1} parent=35 // pred_check_branch
          %177 = sbr.rel (%p175) target = $region40
        $region39: #{tpu_custom_call.1} parent=35 // pred_region
          %s178 = sand.u32 %s72, 1
          %s179 = scalar_lea.sflag [#allocation3], %s178
          %s180 = sand.u32 %s72, 1
          %s181 = smul.addr %s180, 16
          %s182 = scalar_lea.vmem [#allocation2], %s181
          %183 = dma.done %s179, 256
        $region40: #{tpu_custom_call.1} parent=35 // pred_fallthru
          _
      $region36: #{tpu_custom_call.1} parent=5 // pred_fallthru
        _
    $region6: #{tpu_custom_call.1} parent=1 // loop_footer
      %s15 = sadd.s32 1, %s11
    $region7: #{tpu_custom_call.1} parent=1 // loop_footer_branch
      %10 = sbr.rel target = $region3
    $region8: #{tpu_custom_call.1} parent=1 // loop_exit
      _
    %184 = vsyncpa [#allocation3], 1
    %s185 = scalar_lea.sflag [#allocation3], 1
    %186 = vsyncpa %s185, 1

</llo_original>
